<compile_context>
chip_gen: v5e
topology: v5e:2x2
jax: 0.10.0
libtpu: 0.0.40
codegen_flags: <defaults>
</compile_context>

<pallas_src>
import jax
import jax.numpy as jnp
from jax.experimental import pallas as pl
from jax.experimental.pallas import tpu as pltpu


def _round_up(x, m):
    return (x + m - 1) // m * m


def _cdiv(a, b):
    return -(-a // b)


def _make_kernel(pack):
    """Kernel over one batch tile; `pack` rows of the original batch share one
    lane row (pack==1 recovers the plain layout)."""

    def kernel(x_ref, w1_ref, b1_ref, w2_ref, b2_ref, w3_ref, b3_ref, o_ref):
        # x_ref : (TR, pack*NINF)  compute dtype (bf16 default / f32)
        # w1    : (pack*NINF, pack*NH)  block-diag features_merge-as-dense
        # b1    : (1, pack*NH) f32
        # w2    : (pack*NH, pack*NH)    block-diag fc_hid     b2: (1, pack*NH)
        # w3    : (pack, pack*NH) f32   row p = fc_out weights in slot p, 0 else
        # b3    : (1, 1) f32
        x = x_ref[...]

        # features_merge + ReLU  (f32 accumulation on the MXU)
        h = jnp.dot(x, w1_ref[...], preferred_element_type=jnp.float32) + b1_ref[...]
        h = jnp.maximum(h, 0.0)

        # fc_hid + ReLU
        h = jnp.dot(h.astype(x.dtype), w2_ref[...],
                    preferred_element_type=jnp.float32) + b2_ref[...]
        h = jnp.maximum(h, 0.0)

        # dropout(p=0.25): identity at inference.
        # TODO(synk): training-mode dropout (pltpu.prng_seed/prng_random_bits
        #             mask + 1/(1-p) rescale) not implemented.

        # fc_out (NOUT == 1): per-slot masked broadcast-mul + lane reduction on
        # VPU/XLU, tanh on EUP (no tiny-N MXU matmul).
        cols = []
        for p in range(pack):
            w3p = w3_ref[p:p + 1, :]                       # (1, pack*NH)
            cols.append(jnp.sum(h * w3p, axis=-1, keepdims=True))
        y = cols[0] if pack == 1 else jnp.concatenate(cols, axis=-1)
        o_ref[...] = jnp.tanh(y + b3_ref[...])

    return kernel


def e2e_conv_forward(x, params, *, compute_dtype=jnp.bfloat16,
                     max_tile_rows=8192, allow_pack=True):
    """x: (B, NI, NF) float32. Returns (B, 1) float32 == tanh head output."""
    w1, b1, w2, b2, w3, b3 = params
    B, NI, NF = x.shape
    NINF = NI * NF
    NH = w1.shape[1]
    NOUT = w3.shape[1]
    assert w1.shape == (NINF, NH)
    assert NOUT == 1  # TODO(synk): cls_head=True (softmax expectation) head not implemented.

    # --- 2-row lane packing (review item): only when both x rows and the two
    # packed hidden slots fit a single 128-lane row.
    pack = 2 if (allow_pack and NINF <= 64 and NH <= 64) else 1
    K = pack * NINF
    H = pack * NH

    if pack == 2:
        zk = jnp.zeros((NINF, NH), w1.dtype)
        zh = jnp.zeros((NH, NH), w2.dtype)
        w1p = jnp.block([[w1, zk], [zk, w1]])              # (2*NINF, 2*NH)
        w2p = jnp.block([[w2, zh], [zh, w2]])              # (2*NH, 2*NH)
        b1p = jnp.tile(b1, (1, 2))
        b2p = jnp.tile(b2, (1, 2))
        w3row = w3.T                                       # (1, NH)
        zrow = jnp.zeros((1, NH), w3.dtype)
        w3p = jnp.concatenate(
            [jnp.concatenate([w3row, zrow], axis=1),
             jnp.concatenate([zrow, w3row], axis=1)], axis=0)   # (2, 2*NH)
    else:
        w1p, w2p, b1p, b2p = w1, w2, b1, b2
        w3p = w3.T                                         # (1, NH)

    w1c = w1p.astype(compute_dtype)
    w2c = w2p.astype(compute_dtype)
    b1f = b1p.astype(jnp.float32)
    b2f = b2p.astype(jnp.float32)
    w3f = w3p.astype(jnp.float32)
    b3f = b3.astype(jnp.float32)

    # --- Balanced batch tiling (review item).
    R = _cdiv(B, pack)                                     # packed rows needed
    num_tiles = max(1, _cdiv(R, max_tile_rows))
    # Split across the 2 TensorCores on v7x when there is enough work; harmless
    # (one extra tiny grid step) on single-TC v5e/v6e.
    min_split_rows = 1024
    if R >= 2 * min_split_rows:
        num_tiles = _round_up(num_tiles, 2)
    TR = max(128, _round_up(_cdiv(R, num_tiles), 128))     # 128-aligned tile rows
    R_pad = num_tiles * TR
    B_pad = R_pad * pack

    # Flatten (B, NI, NF) -> (B, NI*NF) -> packed (R_pad, pack*NI*NF).
    xf = x.reshape(B, NINF)
    if B_pad != B:
        xf = jnp.pad(xf, ((0, B_pad - B), (0, 0)))
    xp = xf.reshape(R_pad, K).astype(compute_dtype)

    itemsize = jnp.dtype(compute_dtype).itemsize
    cost = pl.CostEstimate(
        flops=2 * R_pad * (K * H + H * H) + 2 * R_pad * H,
        transcendentals=R_pad * pack,
        bytes_accessed=(R_pad * K * itemsize                 # streamed x
                        + (K * H + H * H) * itemsize         # resident weights
                        + (2 * H + pack * H + 1) * 4         # biases + w3 rows
                        + R_pad * pack * 4),                  # output
    )

    out = pl.pallas_call(
        _make_kernel(pack),
        out_shape=jax.ShapeDtypeStruct((R_pad, pack), jnp.float32),
        grid=(num_tiles,),
        in_specs=[
            pl.BlockSpec((TR, K), lambda i: (i, 0)),       # x: streamed batch tiles
            pl.BlockSpec((K, H), lambda i: (0, 0)),        # w1: resident
            pl.BlockSpec((1, H), lambda i: (0, 0)),        # b1
            pl.BlockSpec((H, H), lambda i: (0, 0)),        # w2: resident
            pl.BlockSpec((1, H), lambda i: (0, 0)),        # b2
            pl.BlockSpec((pack, H), lambda i: (0, 0)),     # w3 masked rows
            pl.BlockSpec((1, 1), lambda i: (0, 0)),        # b3
        ],
        out_specs=pl.BlockSpec((TR, pack), lambda i: (i, 0)),
        compiler_params=pltpu.CompilerParams(
            dimension_semantics=("parallel",),             # megacore split on v7x
            vmem_limit_bytes=32 * 1024 * 1024,             # far under v7x 64 MiB
        ),
        cost_estimate=cost,
    )(xp, w1c, b1f, w2c, b2f, w3f, b3f)

    # Un-pack: packed row i holds original rows (pack*i .. pack*i+pack-1).
    return out.reshape(B_pad, 1)[:B]


def make_params(key, n_indicators, n_features, nh, nout=1):
    """PyTorch-default-init-style params, stored as (in_dim, out_dim) matrices.

    features_merge (Conv1d(nf, nh, kernel=ni, stride=ni)) acting on a
    (B, ni, nf) input is the dense map W1 of shape (ni*nf, nh) with
    W1 == torch_conv_weight.transpose(2, 1, 0).reshape(ni*nf, nh).
    TODO(synk): round-trip an actual torch Conv1d weight once to lock in layout.
    """
    ni, nf = n_indicators, n_features
    k1, k1b, k2, k2b, k3, k3b = jax.random.split(key, 6)
    bound = 1.0 / (nf * ni) ** 0.5          # Conv1d fan_in = in_channels * kernel
    w1 = jax.random.uniform(k1, (ni * nf, nh), jnp.float32, -bound, bound)
    b1 = jax.random.uniform(k1b, (1, nh), jnp.float32, -bound, bound)
    bound = 1.0 / nh ** 0.5                 # Linear fan_in = nh
    w2 = jax.random.uniform(k2, (nh, nh), jnp.float32, -bound, bound)
    b2 = jax.random.uniform(k2b, (1, nh), jnp.float32, -bound, bound)
    w3 = jax.random.uniform(k3, (nh, nout), jnp.float32, -bound, bound)
    b3 = jax.random.uniform(k3b, (1, nout), jnp.float32, -bound, bound)
    return (w1, b1, w2, b2, w3, b3)


def reference_forward(x, params):
    """Pure-JAX reference mirroring the PyTorch E2EModelConv.forward (eval)."""
    w1, b1, w2, b2, w3, b3 = params
    B = x.shape[0]
    xf = x.reshape(B, -1)
    h = jnp.maximum(xf @ w1 + b1, 0.0)                       # features_merge + ReLU
    h = jnp.maximum(h @ w2 + b2, 0.0)                        # fc_hid + ReLU
    # dropout(0.25) -> identity (eval); flatten is a no-op for (B, 1, NH)
    y = jnp.sum(h * w3.T, axis=-1, keepdims=True) + b3       # fc_out (nout=1)
    return jnp.tanh(y)                                       # out_func = Tanh


if __name__ == "__main__":
    B, NI, NF, NH = 8, 4, 16, 32  # batch, n_indicators, n_features, nh

    key = jax.random.PRNGKey(0)
    kx, kp = jax.random.split(key)
    x = jax.random.normal(kx, (B, NI, NF), jnp.float32)
    params = make_params(kp, NI, NF, NH, nout=1)

    ref = reference_forward(x, params)

    # Default path: bf16 streaming + 2-row lane packing, f32 accumulation.
    out = jax.block_until_ready(e2e_conv_forward(x, params))
    assert out.shape == (B, 1)
    assert jnp.allclose(out, ref, atol=5e-2, rtol=5e-2), "bf16 packed kernel mismatch"

    # f32 streaming, packed: tight tolerance check of the packing transform.
    out_f32 = jax.block_until_ready(
        e2e_conv_forward(x, params, compute_dtype=jnp.float32))
    assert jnp.allclose(out_f32, ref, atol=1e-4, rtol=1e-4), "f32 packed kernel mismatch"

    # f32 streaming, un-packed (pack=1 fallback path used for large NINF/NH).
    out_plain = jax.block_until_ready(
        e2e_conv_forward(x, params, compute_dtype=jnp.float32, allow_pack=False))
    assert jnp.allclose(out_plain, ref, atol=1e-4, rtol=1e-4), "f32 plain kernel mismatch"

    print("KERNEL_OK")
</pallas_src>

<mosaic_0001>
module attributes {stable_mosaic.version = 11 : i64} {
  func.func @kernel(%arg0: i32, %arg1: memref<128x128xbf16, #tpu.memory_space<vmem>>, %arg2: memref<128x64xbf16, #tpu.memory_space<vmem>>, %arg3: memref<1x64xf32, #tpu.memory_space<vmem>>, %arg4: memref<64x64xbf16, #tpu.memory_space<vmem>>, %arg5: memref<1x64xf32, #tpu.memory_space<vmem>>, %arg6: memref<2x64xf32, #tpu.memory_space<vmem>>, %arg7: memref<1x1xf32, #tpu.memory_space<vmem>>, %arg8: memref<128x2xf32, #tpu.memory_space<vmem>>) attributes {dimension_semantics = [#tpu.dimension_semantics<parallel>], iteration_bounds = array<i64: 1>, scalar_prefetch = 0 : i64, scratch_operands = 0 : i64, tpu.core_type = #tpu.core_type<tc>, window_params = [{transform_indices = @transform_0, window_bounds = array<i64: 128, 128>}, {pipeline_mode = #tpu.pipeline_mode<synchronous>, transform_indices = @transform_1, window_bounds = array<i64: 128, 64>}, {pipeline_mode = #tpu.pipeline_mode<synchronous>, transform_indices = @transform_2, window_bounds = array<i64: 1, 64>}, {pipeline_mode = #tpu.pipeline_mode<synchronous>, transform_indices = @transform_3, window_bounds = array<i64: 64, 64>}, {pipeline_mode = #tpu.pipeline_mode<synchronous>, transform_indices = @transform_4, window_bounds = array<i64: 1, 64>}, {pipeline_mode = #tpu.pipeline_mode<synchronous>, transform_indices = @transform_5, window_bounds = array<i64: 2, 64>}, {pipeline_mode = #tpu.pipeline_mode<synchronous>, transform_indices = @transform_6, window_bounds = array<i64: 1, 1>}, {transform_indices = @transform_7, window_bounds = array<i64: 128, 2>}]} {
    %c0 = arith.constant 0 : index
    %c0_0 = arith.constant 0 : index
    %0 = vector.load %arg1[%c0, %c0_0] : memref<128x128xbf16, #tpu.memory_space<vmem>>, vector<128x128xbf16>
    %c0_1 = arith.constant 0 : index
    %c0_2 = arith.constant 0 : index
    %1 = vector.load %arg2[%c0_1, %c0_2] : memref<128x64xbf16, #tpu.memory_space<vmem>>, vector<128x64xbf16>
    %cst = arith.constant dense<0.000000e+00> : vector<128x64xf32>
    %2 = tpu.matmul %0, %1, %cst {dimension_numbers = #tpu.dot_dimension_numbers<[1], [0], [0], [1], [0, 0, 1, 1], [], []>} : vector<128x128xbf16>, vector<128x64xbf16>, vector<128x64xf32> -> vector<128x64xf32>
    %c0_3 = arith.constant 0 : index
    %c0_4 = arith.constant 0 : index
    %3 = vector.load %arg3[%c0_3, %c0_4] : memref<1x64xf32, #tpu.memory_space<vmem>>, vector<1x64xf32>
    %4 = vector.broadcast %3 : vector<1x64xf32> to vector<128x64xf32>
    %5 = arith.addf %2, %4 : vector<128x64xf32>
    %cst_5 = arith.constant 0.000000e+00 : f32
    %6 = vector.broadcast %cst_5 : f32 to vector<128x64xf32>
    %7 = arith.maximumf %5, %6 : vector<128x64xf32>
    %8 = arith.truncf %7 : vector<128x64xf32> to vector<128x64xbf16>
    %c0_6 = arith.constant 0 : index
    %c0_7 = arith.constant 0 : index
    %9 = vector.load %arg4[%c0_6, %c0_7] : memref<64x64xbf16, #tpu.memory_space<vmem>>, vector<64x64xbf16>
    %cst_8 = arith.constant dense<0.000000e+00> : vector<128x64xf32>
    %10 = tpu.matmul %8, %9, %cst_8 {dimension_numbers = #tpu.dot_dimension_numbers<[1], [0], [0], [1], [0, 0, 1, 1], [], []>} : vector<128x64xbf16>, vector<64x64xbf16>, vector<128x64xf32> -> vector<128x64xf32>
    %c0_9 = arith.constant 0 : index
    %c0_10 = arith.constant 0 : index
    %11 = vector.load %arg5[%c0_9, %c0_10] : memref<1x64xf32, #tpu.memory_space<vmem>>, vector<1x64xf32>
    %12 = vector.broadcast %11 : vector<1x64xf32> to vector<128x64xf32>
    %13 = arith.addf %10, %12 : vector<128x64xf32>
    %cst_11 = arith.constant 0.000000e+00 : f32
    %14 = vector.broadcast %cst_11 : f32 to vector<128x64xf32>
    %15 = arith.maximumf %13, %14 : vector<128x64xf32>
    %c0_12 = arith.constant 0 : index
    %c0_13 = arith.constant 0 : index
    %16 = vector.load %arg6[%c0_12, %c0_13] : memref<2x64xf32, #tpu.memory_space<vmem>>, vector<1x64xf32>
    %17 = vector.broadcast %16 : vector<1x64xf32> to vector<128x64xf32>
    %18 = arith.mulf %15, %17 : vector<128x64xf32>
    %cst_14 = arith.constant dense<0.000000e+00> : vector<128xf32>
    %19 = vector.multi_reduction <add>, %18, %cst_14 [1] : vector<128x64xf32> to vector<128xf32>
    %20 = vector.shape_cast %19 : vector<128xf32> to vector<128x1xf32>
    %c1 = arith.constant 1 : index
    %c0_15 = arith.constant 0 : index
    %21 = vector.load %arg6[%c1, %c0_15] : memref<2x64xf32, #tpu.memory_space<vmem>>, vector<1x64xf32>
    %22 = vector.broadcast %21 : vector<1x64xf32> to vector<128x64xf32>
    %23 = arith.mulf %15, %22 : vector<128x64xf32>
    %cst_16 = arith.constant dense<0.000000e+00> : vector<128xf32>
    %24 = vector.multi_reduction <add>, %23, %cst_16 [1] : vector<128x64xf32> to vector<128xf32>
    %25 = vector.shape_cast %24 : vector<128xf32> to vector<128x1xf32>
    %26 = tpu.concatenate %20, %25 in 1 : vector<128x1xf32>, vector<128x1xf32> -> vector<128x2xf32>
    %c0_17 = arith.constant 0 : index
    %c0_18 = arith.constant 0 : index
    %27 = vector.load %arg7[%c0_17, %c0_18] : memref<1x1xf32, #tpu.memory_space<vmem>>, vector<1x1xf32>
    %28 = vector.broadcast %27 : vector<1x1xf32> to vector<128x2xf32>
    %29 = arith.addf %26, %28 : vector<128x2xf32>
    %30 = math.tanh %29 : vector<128x2xf32>
    %c0_19 = arith.constant 0 : index
    %c0_20 = arith.constant 0 : index
    %31 = vector.load %arg8[%c0_19, %c0_20] : memref<128x2xf32, #tpu.memory_space<vmem>>, vector<128x2xf32>
    tpu.vector_store %arg8[%c0_19, %c0_20], %30 {strides = array<i32>} : memref<128x2xf32, #tpu.memory_space<vmem>>, vector<128x2xf32>,
    return
  }
  func.func @transform_0(%arg0: i32) -> (i32, i32) {
    %c0_i32 = arith.constant 0 : i32
    %c0_i32_0 = arith.constant 0 : i32
    return %arg0, %c0_i32 : i32, i32
  }
  func.func @transform_1(%arg0: i32) -> (i32, i32) {
    %c0_i32 = arith.constant 0 : i32
    %c0_i32_0 = arith.constant 0 : i32
    %c0_i32_1 = arith.constant 0 : i32
    return %c0_i32, %c0_i32_0 : i32, i32
  }
  func.func @transform_2(%arg0: i32) -> (i32, i32) {
    %c0_i32 = arith.constant 0 : i32
    %c0_i32_0 = arith.constant 0 : i32
    %c0_i32_1 = arith.constant 0 : i32
    return %c0_i32, %c0_i32_0 : i32, i32
  }
  func.func @transform_3(%arg0: i32) -> (i32, i32) {
    %c0_i32 = arith.constant 0 : i32
    %c0_i32_0 = arith.constant 0 : i32
    %c0_i32_1 = arith.constant 0 : i32
    return %c0_i32, %c0_i32_0 : i32, i32
  }
  func.func @transform_4(%arg0: i32) -> (i32, i32) {
    %c0_i32 = arith.constant 0 : i32
    %c0_i32_0 = arith.constant 0 : i32
    %c0_i32_1 = arith.constant 0 : i32
    return %c0_i32, %c0_i32_0 : i32, i32
  }
  func.func @transform_5(%arg0: i32) -> (i32, i32) {
    %c0_i32 = arith.constant 0 : i32
    %c0_i32_0 = arith.constant 0 : i32
    %c0_i32_1 = arith.constant 0 : i32
    return %c0_i32, %c0_i32_0 : i32, i32
  }
  func.func @transform_6(%arg0: i32) -> (i32, i32) {
    %c0_i32 = arith.constant 0 : i32
    %c0_i32_0 = arith.constant 0 : i32
    %c0_i32_1 = arith.constant 0 : i32
    return %c0_i32, %c0_i32_0 : i32, i32
  }
  func.func @transform_7(%arg0: i32) -> (i32, i32) {
    %c0_i32 = arith.constant 0 : i32
    %c0_i32_0 = arith.constant 0 : i32
    return %arg0, %c0_i32 : i32, i32
  }
}

</mosaic_0001>

<llo_original>
// kernel: tpu_custom_call.1
$region0: #{tpu_custom_call.1}
  #allocation0 [shape = 'u32[]', space=smem, size = 0x4, offset = 0x4, fixed_abs, tag = 'smem constant byte address 0x4 - core index']
  #allocation1 [shape = 'u32[72,128]{1,0:T(1,128)}', space=vmem, size = 0x9000, scoped, tag = 'internal scratch']
  #allocation2 [shape = 'f32[1,1]{1,0:T(1,128)S(1)}', space=vmem, size = 0x200, scoped, tag = 'scoped memory for tpu_custom_call.1']
  %s0 = inlined_call_operand.vmem [shape: bf16[128,128], index: 0, kind: input, shape index: {}]
  %s1 = inlined_call_operand.vmem [shape: bf16[128,64], index: 1, kind: input, shape index: {}]
  %s2 = inlined_call_operand.vmem [shape: f32[1,64], index: 2, kind: input, shape index: {}]
  %s3 = inlined_call_operand.vmem [shape: bf16[64,64], index: 3, kind: input, shape index: {}]
  %s4 = inlined_call_operand.vmem [shape: f32[1,64], index: 4, kind: input, shape index: {}]
  %s5 = inlined_call_operand.vmem [shape: f32[2,64], index: 5, kind: input, shape index: {}]
  %s6 = inlined_call_operand.<no memory space> [shape: f32[1,1], index: 6, kind: input, shape index: {}]
  %s7 = inlined_call_operand.vmem [shape: f32[128,2], index: 7, kind: output, shape index: {}]
  %s8 = sld [smem:[#allocation0]]
  $region38: #{tpu_custom_call.1} parent=0
    _
  %s10 = ssub.s32 1, %s8
  %s11 = scalar_select 0, %s10, %s8
  %v12 = vstv %s6
  %13 = vst [vmem:[#allocation2] sm:$0x1] %v12
  // Predicated region
  $region2: #{tpu_custom_call.1} parent=0 // pred_check
    _
  $region3: #{tpu_custom_call.1} parent=0 // pred_check_branch
    %15 = sbr.rel (0) target = $region5
  $region4: #{tpu_custom_call.1} parent=0 // pred_region
    _
  $region5: #{tpu_custom_call.1} parent=0 // pred_fallthru
    _
  // Predicated region
  $region6: #{tpu_custom_call.1} parent=0 // pred_check
    _
  $region7: #{tpu_custom_call.1} parent=0 // pred_check_branch
    %17 = sbr.rel (0) target = $region9
  $region8: #{tpu_custom_call.1} parent=0 // pred_region
    _
  $region9: #{tpu_custom_call.1} parent=0 // pred_fallthru
    _
  // Predicated region
  $region10: #{tpu_custom_call.1} parent=0 // pred_check
    _
  $region11: #{tpu_custom_call.1} parent=0 // pred_check_branch
    %19 = sbr.rel (0) target = $region13
  $region12: #{tpu_custom_call.1} parent=0 // pred_region
    _
  $region13: #{tpu_custom_call.1} parent=0 // pred_fallthru
    _
  // Predicated region
  $region14: #{tpu_custom_call.1} parent=0 // pred_check
    _
  $region15: #{tpu_custom_call.1} parent=0 // pred_check_branch
    %21 = sbr.rel (0) target = $region17
  $region16: #{tpu_custom_call.1} parent=0 // pred_region
    _
  $region17: #{tpu_custom_call.1} parent=0 // pred_fallthru
    _
  // Predicated region
  $region18: #{tpu_custom_call.1} parent=0 // pred_check
    _
  $region19: #{tpu_custom_call.1} parent=0 // pred_check_branch
    %23 = sbr.rel (0) target = $region21
  $region20: #{tpu_custom_call.1} parent=0 // pred_region
    _
  $region21: #{tpu_custom_call.1} parent=0 // pred_fallthru
    _
  // Predicated region
  $region22: #{tpu_custom_call.1} parent=0 // pred_check
    _
  $region23: #{tpu_custom_call.1} parent=0 // pred_check_branch
    %25 = sbr.rel (0) target = $region25
  $region24: #{tpu_custom_call.1} parent=0 // pred_region
    _
  $region25: #{tpu_custom_call.1} parent=0 // pred_fallthru
    _
  // Predicated region
  $region26: #{tpu_custom_call.1} parent=0 // pred_check
    _
  $region27: #{tpu_custom_call.1} parent=0 // pred_check_branch
    %27 = sbr.rel (0) target = $region29
  $region28: #{tpu_custom_call.1} parent=0 // pred_region
    _
  $region29: #{tpu_custom_call.1} parent=0 // pred_fallthru
    _
  %v29 = vld [vmem:[%s0] sm:$0xf]
  %v30 = vld [vmem:[%s0 + $0x4] sm:$0xf]
  %v31 = vld [vmem:[%s0 + $0x8] sm:$0xf]
  %v32 = vld [vmem:[%s0 + $0xc] sm:$0xf]
  %v33 = vld [vmem:[%s0 + $0x10] sm:$0xf]
  %v34 = vld [vmem:[%s0 + $0x14] sm:$0xf]
  %v35 = vld [vmem:[%s0 + $0x18] sm:$0xf]
  %v36 = vld [vmem:[%s0 + $0x1c] sm:$0xf]
  %v37 = vld [vmem:[%s0 + $0x20] sm:$0xf]
  %v38 = vld [vmem:[%s0 + $0x24] sm:$0xf]
  %v39 = vld [vmem:[%s0 + $0x28] sm:$0xf]
  %v40 = vld [vmem:[%s0 + $0x2c] sm:$0xf]
  %v41 = vld [vmem:[%s0 + $0x30] sm:$0xf]
  %v42 = vld [vmem:[%s0 + $0x34] sm:$0xf]
  %v43 = vld [vmem:[%s0 + $0x38] sm:$0xf]
  %v44 = vld [vmem:[%s0 + $0x3c] sm:$0xf]
  %v45 = vld [vmem:[%s1] sm:$0xf]
  %v46 = vld [vmem:[%s1 + $0x4] sm:$0xf]
  %v47 = vld [vmem:[%s1 + $0x8] sm:$0xf]
  %v48 = vld [vmem:[%s1 + $0xc] sm:$0xf]
  %v49 = vld [vmem:[%s1 + $0x10] sm:$0xf]
  %v50 = vld [vmem:[%s1 + $0x14] sm:$0xf]
  %v51 = vld [vmem:[%s1 + $0x18] sm:$0xf]
  %v52 = vld [vmem:[%s1 + $0x1c] sm:$0xf]
  %v53 = vld [vmem:[%s1 + $0x20] sm:$0xf]
  %v54 = vld [vmem:[%s1 + $0x24] sm:$0xf]
  %v55 = vld [vmem:[%s1 + $0x28] sm:$0xf]
  %v56 = vld [vmem:[%s1 + $0x2c] sm:$0xf]
  %v57 = vld [vmem:[%s1 + $0x30] sm:$0xf]
  %v58 = vld [vmem:[%s1 + $0x34] sm:$0xf]
  %v59 = vld [vmem:[%s1 + $0x38] sm:$0xf]
  %v60 = vld [vmem:[%s1 + $0x3c] sm:$0xf]
  %v61 = vld [vmem:[%s2] sm:$0x1]
  %v63 = vperm.slane %v61, 0
  %v81 = vunpack.c.l.b16 %v29
  %v82 = vunpack.c.l.b16 %v30
  %v83 = vunpack.c.l.b16 %v31
  %v84 = vunpack.c.l.b16 %v32
  %v85 = vunpack.c.l.b16 %v33
  %v86 = vunpack.c.l.b16 %v34
  %v87 = vunpack.c.l.b16 %v35
  %v88 = vunpack.c.l.b16 %v36
  %v89 = vunpack.c.l.b16 %v37
  %v90 = vunpack.c.l.b16 %v38
  %v91 = vunpack.c.l.b16 %v39
  %v92 = vunpack.c.l.b16 %v40
  %v93 = vunpack.c.l.b16 %v41
  %v94 = vunpack.c.l.b16 %v42
  %v95 = vunpack.c.l.b16 %v43
  %v96 = vunpack.c.l.b16 %v44
  %v97 = vpack.c.b16 %v82, %v81
  %v98 = vpack.c.b16 %v84, %v83
  %v99 = vpack.c.b16 %v86, %v85
  %v100 = vpack.c.b16 %v88, %v87
  %v101 = vpack.c.b16 %v90, %v89
  %v102 = vpack.c.b16 %v92, %v91
  %v103 = vpack.c.b16 %v94, %v93
  %v104 = vpack.c.b16 %v96, %v95
  %v129 = vunpack.c.l.b16 %v45
  %v130 = vunpack.c.l.b16 %v46
  %v131 = vunpack.c.l.b16 %v47
  %v132 = vunpack.c.l.b16 %v48
  %v133 = vunpack.c.l.b16 %v49
  %v134 = vunpack.c.l.b16 %v50
  %v135 = vunpack.c.l.b16 %v51
  %v136 = vunpack.c.l.b16 %v52
  %v137 = vunpack.c.l.b16 %v53
  %v138 = vunpack.c.l.b16 %v54
  %v139 = vunpack.c.l.b16 %v55
  %v140 = vunpack.c.l.b16 %v56
  %v141 = vunpack.c.l.b16 %v57
  %v142 = vunpack.c.l.b16 %v58
  %v143 = vunpack.c.l.b16 %v59
  %v144 = vunpack.c.l.b16 %v60
  %v145 = vpack.c.b16 %v130, %v129
  %v146 = vpack.c.b16 %v132, %v131
  %v147 = vpack.c.b16 %v134, %v133
  %v148 = vpack.c.b16 %v136, %v135
  %v149 = vpack.c.b16 %v138, %v137
  %v150 = vpack.c.b16 %v140, %v139
  %v151 = vpack.c.b16 %v142, %v141
  %v152 = vpack.c.b16 %v144, %v143
  %161 = vmatpush.bf16.msra.mxu0 %v152
  %162 = vmatpush.bf16.msra.mxu0 %v151
  %163 = vmatpush.bf16.msra.mxu0 %v150
  %164 = vmatpush.bf16.msra.mxu0 %v149
  %165 = vmatpush.bf16.msra.mxu0 %v148
  %166 = vmatpush.bf16.msra.mxu0 %v147
  %167 = vmatpush.bf16.msra.mxu0 %v146
  %168 = vmatpush.bf16.msra.mxu0 %v145
  %169 = vmatmul.bf16.gmra.mxu0 %v97
  %v170 = vpop.f32.mrf.mxu0
  %v171 = vadd.f32 %v63, %v170
  %v172 = vpop.f32.mrf.mxu0
  %v173 = vadd.f32 %v63, %v172
  %174 = vmatmul.bf16.gmra.mxu0 %v98
  %v175 = vpop.f32.mrf.mxu0
  %v176 = vadd.f32 %v63, %v175
  %v177 = vpop.f32.mrf.mxu0
  %v178 = vadd.f32 %v63, %v177
  %179 = vmatmul.bf16.gmra.mxu0 %v99
  %v180 = vpop.f32.mrf.mxu0
  %v181 = vadd.f32 %v63, %v180
  %v182 = vpop.f32.mrf.mxu0
  %v183 = vadd.f32 %v63, %v182
  %184 = vmatmul.bf16.gmra.mxu0 %v100
  %v185 = vpop.f32.mrf.mxu0
  %v186 = vadd.f32 %v63, %v185
  %v187 = vpop.f32.mrf.mxu0
  %v188 = vadd.f32 %v63, %v187
  %189 = vmatmul.bf16.gmra.mxu0 %v101
  %v190 = vpop.f32.mrf.mxu0
  %v191 = vadd.f32 %v63, %v190
  %v192 = vpop.f32.mrf.mxu0
  %v193 = vadd.f32 %v63, %v192
  %194 = vmatmul.bf16.gmra.mxu0 %v102
  %v195 = vpop.f32.mrf.mxu0
  %v196 = vadd.f32 %v63, %v195
  %v197 = vpop.f32.mrf.mxu0
  %v198 = vadd.f32 %v63, %v197
  %199 = vmatmul.bf16.gmra.mxu0 %v103
  %v200 = vpop.f32.mrf.mxu0
  %v201 = vadd.f32 %v63, %v200
  %v202 = vpop.f32.mrf.mxu0
  %v203 = vadd.f32 %v63, %v202
  %204 = vmatmul.bf16.gmra.mxu0 %v104
  %v205 = vpop.f32.mrf.mxu0
  %v206 = vadd.f32 %v63, %v205
  %v207 = vpop.f32.mrf.mxu0
  %v208 = vadd.f32 %v63, %v207
  %209 = vdwg.mxu0
  %v210 = vmax.f32 %v171, 0.0
  %v211 = vmax.f32 %v173, 0.0
  %v212 = vmax.f32 %v176, 0.0
  %v213 = vmax.f32 %v178, 0.0
  %v214 = vmax.f32 %v181, 0.0
  %v215 = vmax.f32 %v183, 0.0
  %v216 = vmax.f32 %v186, 0.0
  %v217 = vmax.f32 %v188, 0.0
  %v218 = vmax.f32 %v191, 0.0
  %v219 = vmax.f32 %v193, 0.0
  %v220 = vmax.f32 %v196, 0.0
  %v221 = vmax.f32 %v198, 0.0
  %v222 = vmax.f32 %v201, 0.0
  %v223 = vmax.f32 %v203, 0.0
  %v224 = vmax.f32 %v206, 0.0
  %v225 = vmax.f32 %v208, 0.0
  %v226 = vpack.c.bf16 %v211, %v210
  %v227 = vpack.c.bf16 %v213, %v212
  %v228 = vpack.c.bf16 %v215, %v214
  %v229 = vpack.c.bf16 %v217, %v216
  %v230 = vpack.c.bf16 %v219, %v218
  %v231 = vpack.c.bf16 %v221, %v220
  %v232 = vpack.c.bf16 %v223, %v222
  %v233 = vpack.c.bf16 %v225, %v224
  %v234 = vld [vmem:[%s3] sm:$0xf]
  %v235 = vld [vmem:[%s3 + $0x4] sm:$0xf]
  %v236 = vld [vmem:[%s3 + $0x8] sm:$0xf]
  %v237 = vld [vmem:[%s3 + $0xc] sm:$0xf]
  %v238 = vld [vmem:[%s3 + $0x10] sm:$0xf]
  %v239 = vld [vmem:[%s3 + $0x14] sm:$0xf]
  %v240 = vld [vmem:[%s3 + $0x18] sm:$0xf]
  %v241 = vld [vmem:[%s3 + $0x1c] sm:$0xf]
  %v242 = vld [vmem:[%s4] sm:$0x1]
  %v244 = vperm.slane %v242, 0
  %v254 = vunpack.c.l.b16 %v234
  %v255 = vunpack.c.l.b16 %v235
  %v256 = vunpack.c.l.b16 %v236
  %v257 = vunpack.c.l.b16 %v237
  %v258 = vunpack.c.l.b16 %v238
  %v259 = vunpack.c.l.b16 %v239
  %v260 = vunpack.c.l.b16 %v240
  %v261 = vunpack.c.l.b16 %v241
  %v262 = vpack.c.b16 %v255, %v254
  %v263 = vpack.c.b16 %v257, %v256
  %v264 = vpack.c.b16 %v259, %v258
  %v265 = vpack.c.b16 %v261, %v260
  %vm270 = vcmask 523264
  %v272 = vsel %vm270, %v226, 0
  %v275 = vsel %vm270, %v227, 0
  %v278 = vsel %vm270, %v228, 0
  %v281 = vsel %vm270, %v229, 0
  %v284 = vsel %vm270, %v230, 0
  %v287 = vsel %vm270, %v231, 0
  %v290 = vsel %vm270, %v232, 0
  %v293 = vsel %vm270, %v233, 0
  %295 = vmatpush.bf16.msra.mxu0 0
  %296 = vmatpush.bf16.msra.mxu0 0
  %297 = vmatpush.bf16.msra.mxu0 0
  %298 = vmatpush.bf16.msra.mxu0 0
  %299 = vmatpush.bf16.msra.mxu0 %v265
  %300 = vmatpush.bf16.msra.mxu0 %v264
  %301 = vmatpush.bf16.msra.mxu0 %v263
  %302 = vmatpush.bf16.msra.mxu0 %v262
  %303 = vmatmul.bf16.gmra.mxu0 %v272
  %v304 = vpop.f32.mrf.mxu0
  %v305 = vadd.f32 %v244, %v304
  %v306 = vpop.f32.mrf.mxu0
  %v307 = vadd.f32 %v244, %v306
  %308 = vmatmul.bf16.gmra.mxu0 %v275
  %v309 = vpop.f32.mrf.mxu0
  %v310 = vadd.f32 %v244, %v309
  %v311 = vpop.f32.mrf.mxu0
  %v312 = vadd.f32 %v244, %v311
  %313 = vmatmul.bf16.gmra.mxu0 %v278
  %v314 = vpop.f32.mrf.mxu0
  %v315 = vadd.f32 %v244, %v314
  %v316 = vpop.f32.mrf.mxu0
  %v317 = vadd.f32 %v244, %v316
  %318 = vmatmul.bf16.gmra.mxu0 %v281
  %v319 = vpop.f32.mrf.mxu0
  %v320 = vadd.f32 %v244, %v319
  %v321 = vpop.f32.mrf.mxu0
  %v322 = vadd.f32 %v244, %v321
  %323 = vmatmul.bf16.gmra.mxu0 %v284
  %v324 = vpop.f32.mrf.mxu0
  %v325 = vadd.f32 %v244, %v324
  %v326 = vpop.f32.mrf.mxu0
  %v327 = vadd.f32 %v244, %v326
  %328 = vmatmul.bf16.gmra.mxu0 %v287
  %v329 = vpop.f32.mrf.mxu0
  %v330 = vadd.f32 %v244, %v329
  %v331 = vpop.f32.mrf.mxu0
  %v332 = vadd.f32 %v244, %v331
  %333 = vmatmul.bf16.gmra.mxu0 %v290
  %v334 = vpop.f32.mrf.mxu0
  %v335 = vadd.f32 %v244, %v334
  %v336 = vpop.f32.mrf.mxu0
  %v337 = vadd.f32 %v244, %v336
  %338 = vmatmul.bf16.gmra.mxu0 %v293
  %v339 = vpop.f32.mrf.mxu0
  %v340 = vadd.f32 %v244, %v339
  %v341 = vpop.f32.mrf.mxu0
  %v342 = vadd.f32 %v244, %v341
  %343 = vdwg.mxu0
  %v344 = vmax.f32 %v305, 0.0
  %v345 = vmax.f32 %v307, 0.0
  %v346 = vmax.f32 %v310, 0.0
  %v347 = vmax.f32 %v312, 0.0
  %v348 = vmax.f32 %v315, 0.0
  %v349 = vmax.f32 %v317, 0.0
  %v350 = vmax.f32 %v320, 0.0
  %v351 = vmax.f32 %v322, 0.0
  %v352 = vmax.f32 %v325, 0.0
  %v353 = vmax.f32 %v327, 0.0
  %v354 = vmax.f32 %v330, 0.0
  %v355 = vmax.f32 %v332, 0.0
  %v356 = vmax.f32 %v335, 0.0
  %v357 = vmax.f32 %v337, 0.0
  %v358 = vmax.f32 %v340, 0.0
  %v359 = vmax.f32 %v342, 0.0
  %v360 = vld [vmem:[%s5] sm:$0x1]
  %v361 = vperm.slane %v360, 0
  %v362 = vmul.f32 %v344, %v361
  %v363 = vmul.f32 %v345, %v361
  %v364 = vmul.f32 %v346, %v361
  %v365 = vmul.f32 %v347, %v361
  %v366 = vmul.f32 %v348, %v361
  %v367 = vmul.f32 %v349, %v361
  %v368 = vmul.f32 %v350, %v361
  %v369 = vmul.f32 %v351, %v361
  %v370 = vmul.f32 %v352, %v361
  %v371 = vmul.f32 %v353, %v361
  %v372 = vmul.f32 %v354, %v361
  %v373 = vmul.f32 %v355, %v361
  %v374 = vmul.f32 %v356, %v361
  %v375 = vmul.f32 %v357, %v361
  %v376 = vmul.f32 %v358, %v361
  %v377 = vmul.f32 %v359, %v361
  %v378 = vsel %vm270, %v362, 0.0
  %379 = vadd.xlane.f32.xlu0 %v378
  %v380 = vpop.xlane.xlu0 %379
  %v381 = vsel %vm270, %v363, 0.0
  %382 = vadd.xlane.f32.xlu0 %v381
  %v383 = vpop.xlane.xlu0 %382
  %v384 = vsel %vm270, %v364, 0.0
  %385 = vadd.xlane.f32.xlu0 %v384
  %v386 = vpop.xlane.xlu0 %385
  %v387 = vsel %vm270, %v365, 0.0
  %388 = vadd.xlane.f32.xlu0 %v387
  %v389 = vpop.xlane.xlu0 %388
  %v390 = vsel %vm270, %v366, 0.0
  %391 = vadd.xlane.f32.xlu0 %v390
  %v392 = vpop.xlane.xlu0 %391
  %v393 = vsel %vm270, %v367, 0.0
  %394 = vadd.xlane.f32.xlu0 %v393
  %v395 = vpop.xlane.xlu0 %394
  %v396 = vsel %vm270, %v368, 0.0
  %397 = vadd.xlane.f32.xlu0 %v396
  %v398 = vpop.xlane.xlu0 %397
  %v399 = vsel %vm270, %v369, 0.0
  %400 = vadd.xlane.f32.xlu0 %v399
  %v401 = vpop.xlane.xlu0 %400
  %v402 = vsel %vm270, %v370, 0.0
  %403 = vadd.xlane.f32.xlu0 %v402
  %v404 = vpop.xlane.xlu0 %403
  %v405 = vsel %vm270, %v371, 0.0
  %406 = vadd.xlane.f32.xlu0 %v405
  %v407 = vpop.xlane.xlu0 %406
  %v408 = vsel %vm270, %v372, 0.0
  %409 = vadd.xlane.f32.xlu0 %v408
  %v410 = vpop.xlane.xlu0 %409
  %v411 = vsel %vm270, %v373, 0.0
  %412 = vadd.xlane.f32.xlu0 %v411
  %v413 = vpop.xlane.xlu0 %412
  %v414 = vsel %vm270, %v374, 0.0
  %415 = vadd.xlane.f32.xlu0 %v414
  %v416 = vpop.xlane.xlu0 %415
  %v417 = vsel %vm270, %v375, 0.0
  %418 = vadd.xlane.f32.xlu0 %v417
  %v419 = vpop.xlane.xlu0 %418
  %v420 = vsel %vm270, %v376, 0.0
  %421 = vadd.xlane.f32.xlu0 %v420
  %v422 = vpop.xlane.xlu0 %421
  %v423 = vsel %vm270, %v377, 0.0
  %424 = vadd.xlane.f32.xlu0 %v423
  %v425 = vpop.xlane.xlu0 %424
  %v426 = vld [vmem:[%s5 + $0x1] sm:$0x1]
  %v427 = vperm.slane %v426, 0
  %v428 = vmul.f32 %v344, %v427
  %v429 = vmul.f32 %v345, %v427
  %v430 = vmul.f32 %v346, %v427
  %v431 = vmul.f32 %v347, %v427
  %v432 = vmul.f32 %v348, %v427
  %v433 = vmul.f32 %v349, %v427
  %v434 = vmul.f32 %v350, %v427
  %v435 = vmul.f32 %v351, %v427
  %v436 = vmul.f32 %v352, %v427
  %v437 = vmul.f32 %v353, %v427
  %v438 = vmul.f32 %v354, %v427
  %v439 = vmul.f32 %v355, %v427
  %v440 = vmul.f32 %v356, %v427
  %v441 = vmul.f32 %v357, %v427
  %v442 = vmul.f32 %v358, %v427
  %v443 = vmul.f32 %v359, %v427
  %v444 = vsel %vm270, %v428, 0.0
  %445 = vadd.xlane.f32.xlu0 %v444
  %v446 = vpop.xlane.xlu0 %445
  %v447 = vsel %vm270, %v429, 0.0
  %448 = vadd.xlane.f32.xlu0 %v447
  %v449 = vpop.xlane.xlu0 %448
  %v450 = vsel %vm270, %v430, 0.0
  %451 = vadd.xlane.f32.xlu0 %v450
  %v452 = vpop.xlane.xlu0 %451
  %v453 = vsel %vm270, %v431, 0.0
  %454 = vadd.xlane.f32.xlu0 %v453
  %v455 = vpop.xlane.xlu0 %454
  %v456 = vsel %vm270, %v432, 0.0
  %457 = vadd.xlane.f32.xlu0 %v456
  %v458 = vpop.xlane.xlu0 %457
  %v459 = vsel %vm270, %v433, 0.0
  %460 = vadd.xlane.f32.xlu0 %v459
  %v461 = vpop.xlane.xlu0 %460
  %v462 = vsel %vm270, %v434, 0.0
  %463 = vadd.xlane.f32.xlu0 %v462
  %v464 = vpop.xlane.xlu0 %463
  %v465 = vsel %vm270, %v435, 0.0
  %466 = vadd.xlane.f32.xlu0 %v465
  %v467 = vpop.xlane.xlu0 %466
  %v468 = vsel %vm270, %v436, 0.0
  %469 = vadd.xlane.f32.xlu0 %v468
  %v470 = vpop.xlane.xlu0 %469
  %v471 = vsel %vm270, %v437, 0.0
  %472 = vadd.xlane.f32.xlu0 %v471
  %v473 = vpop.xlane.xlu0 %472
  %v474 = vsel %vm270, %v438, 0.0
  %475 = vadd.xlane.f32.xlu0 %v474
  %v476 = vpop.xlane.xlu0 %475
  %v477 = vsel %vm270, %v439, 0.0
  %478 = vadd.xlane.f32.xlu0 %v477
  %v479 = vpop.xlane.xlu0 %478
  %v480 = vsel %vm270, %v440, 0.0
  %481 = vadd.xlane.f32.xlu0 %v480
  %v482 = vpop.xlane.xlu0 %481
  %v483 = vsel %vm270, %v441, 0.0
  %484 = vadd.xlane.f32.xlu0 %v483
  %v485 = vpop.xlane.xlu0 %484
  %v486 = vsel %vm270, %v442, 0.0
  %487 = vadd.xlane.f32.xlu0 %v486
  %v488 = vpop.xlane.xlu0 %487
  %v489 = vsel %vm270, %v443, 0.0
  %490 = vadd.xlane.f32.xlu0 %v489
  %v491 = vpop.xlane.xlu0 %490
  %vm492 = vcmask 7168
  %v493 = vsel %vm492, %v380, %v446
  %v494 = vsel %vm492, %v383, %v449
  %v495 = vsel %vm492, %v386, %v452
  %v496 = vsel %vm492, %v389, %v455
  %v497 = vsel %vm492, %v392, %v458
  %v498 = vsel %vm492, %v395, %v461
  %v499 = vsel %vm492, %v398, %v464
  %v500 = vsel %vm492, %v401, %v467
  %v501 = vsel %vm492, %v404, %v470
  %v502 = vsel %vm492, %v407, %v473
  %v503 = vsel %vm492, %v410, %v476
  %v504 = vsel %vm492, %v413, %v479
  %v505 = vsel %vm492, %v416, %v482
  %v506 = vsel %vm492, %v419, %v485
  %v507 = vsel %vm492, %v422, %v488
  %v508 = vsel %vm492, %v425, %v491
  %v509 = vld [vmem:[#allocation2] sm:$0x1]
  %v511 = vperm.slane %v509, 0
  %512 = vset.pattern.permute.xlu0 0
  %513 = vperm.xlu0 %512, %v511
  %v514 = vpop.permute.xlu0 %513
  %v516 = vadd.f32 %v493, %v514
  %v517 = vadd.f32 %v494, %v514
  %v518 = vadd.f32 %v495, %v514
  %v519 = vadd.f32 %v496, %v514
  %v520 = vadd.f32 %v497, %v514
  %v521 = vadd.f32 %v498, %v514
  %v522 = vadd.f32 %v499, %v514
  %v523 = vadd.f32 %v500, %v514
  %v524 = vadd.f32 %v501, %v514
  %v525 = vadd.f32 %v502, %v514
  %v526 = vadd.f32 %v503, %v514
  %v527 = vadd.f32 %v504, %v514
  %v528 = vadd.f32 %v505, %v514
  %v529 = vadd.f32 %v506, %v514
  %v530 = vadd.f32 %v507, %v514
  %v531 = vadd.f32 %v508, %v514
  %v532 = vtanh.pop %v516
  %v533 = vtanh.pop %v517
  %v534 = vtanh.pop %v518
  %v535 = vtanh.pop %v519
  %v536 = vtanh.pop %v520
  %v537 = vtanh.pop %v521
  %v538 = vtanh.pop %v522
  %v539 = vtanh.pop %v523
  %v540 = vtanh.pop %v524
  %v541 = vtanh.pop %v525
  %v542 = vtanh.pop %v526
  %v543 = vtanh.pop %v527
  %v544 = vtanh.pop %v528
  %v545 = vtanh.pop %v529
  %v546 = vtanh.pop %v530
  %v547 = vtanh.pop %v531
  %vm548 = vcmask 15360
  %549 = vst.msk [vmem:[%s7] sm:$0xff] %vm548, %v532
  %550 = vst.msk [vmem:[%s7 + $0x8] sm:$0xff] %vm548, %v533
  %551 = vst.msk [vmem:[%s7 + $0x10] sm:$0xff] %vm548, %v534
  %552 = vst.msk [vmem:[%s7 + $0x18] sm:$0xff] %vm548, %v535
  %553 = vst.msk [vmem:[%s7 + $0x20] sm:$0xff] %vm548, %v536
  %554 = vst.msk [vmem:[%s7 + $0x28] sm:$0xff] %vm548, %v537
  %555 = vst.msk [vmem:[%s7 + $0x30] sm:$0xff] %vm548, %v538
  %556 = vst.msk [vmem:[%s7 + $0x38] sm:$0xff] %vm548, %v539
  %557 = vst.msk [vmem:[%s7 + $0x40] sm:$0xff] %vm548, %v540
  %558 = vst.msk [vmem:[%s7 + $0x48] sm:$0xff] %vm548, %v541
  %559 = vst.msk [vmem:[%s7 + $0x50] sm:$0xff] %vm548, %v542
  %560 = vst.msk [vmem:[%s7 + $0x58] sm:$0xff] %vm548, %v543
  %561 = vst.msk [vmem:[%s7 + $0x60] sm:$0xff] %vm548, %v544
  %562 = vst.msk [vmem:[%s7 + $0x68] sm:$0xff] %vm548, %v545
  %563 = vst.msk [vmem:[%s7 + $0x70] sm:$0xff] %vm548, %v546
  %564 = vst.msk [vmem:[%s7 + $0x78] sm:$0xff] %vm548, %v547
  // Predicated region
  $region30: #{tpu_custom_call.1} parent=0 // pred_check
    _
  $region31: #{tpu_custom_call.1} parent=0 // pred_check_branch
    %566 = sbr.rel (0) target = $region33
  $region32: #{tpu_custom_call.1} parent=0 // pred_region
    _
  $region33: #{tpu_custom_call.1} parent=0 // pred_fallthru
    _
  // Predicated region
  $region34: #{tpu_custom_call.1} parent=0 // pred_check
    _
  $region35: #{tpu_custom_call.1} parent=0 // pred_check_branch
    %568 = sbr.rel (0) target = $region37
  $region36: #{tpu_custom_call.1} parent=0 // pred_region
    _
  $region37: #{tpu_custom_call.1} parent=0 // pred_fallthru
    _

</llo_original>
